<compile_context>
chip_gen: v7x
topology: tpu7x:2x2x1
jax: 0.10.0
libtpu: 0.0.40
codegen_flags: <defaults>
</compile_context>

<pallas_src>
import math
from functools import partial

import jax
import jax.numpy as jnp
from jax.experimental import pallas as pl
from jax.experimental.pallas import tpu as pltpu

EPS = 1e-5
VMEM_LIMIT_BYTES = 48 * 1024 * 1024      # explicit scoped-VMEM limit (< v7x 64 MiB physical)
VMEM_TILE_BUDGET = 24 * 1024 * 1024      # target double-buffered working set per pass


def _round_up(x, m):
    return ((x + m - 1) // m) * m


def _pick_tile_n(n, in_dim, out_dim, x_itemsize):
    """Largest row tile (<=512, multiple of 8) whose double-buffered working set fits budget."""
    fixed = in_dim * out_dim * x_itemsize + 16 * out_dim * 4   # resident W + stats/scratch
    per_row = 2 * (in_dim * x_itemsize + 2 * out_dim * 4)      # 2x-buffered x in + y out
    tile = 512
    while tile > 8 and fixed + tile * per_row > VMEM_TILE_BUDGET:
        tile //= 2
    return min(tile, _round_up(max(n, 1), 8))


def _matmul_stats_kernel(x_ref, w_ref, g_ref, b_ref, y_ref, stats_ref,
                         sum_ref, sumsq_ref, *, n_rows):
    """Pass 1: y = x @ W; accumulate per-feature sum / sum-of-squares; finalize scale/shift."""
    pid = pl.program_id(0)

    @pl.when(pid == 0)
    def _init():
        sum_ref[...] = jnp.zeros_like(sum_ref)
        sumsq_ref[...] = jnp.zeros_like(sumsq_ref)

    # MXU matmul: bf16 inputs, f32 accumulation.  Linear bias intentionally omitted
    # (exactly cancelled by the training-mode BN mean subtraction below).
    y = jnp.dot(x_ref[...], w_ref[...], preferred_element_type=jnp.float32)
    y_ref[...] = y

    # Single pass over y: running sum and sum-of-squares (finalized once at the end)
    # instead of mean -> center -> mean-of-squares (two full passes over the big tile).
    sum_ref[...] += jnp.sum(y, axis=0, keepdims=True)
    sumsq_ref[...] += jnp.sum(y * y, axis=0, keepdims=True)

    @pl.when(pid == pl.num_programs(0) - 1)
    def _finalize():
        inv_n = 1.0 / n_rows                                  # true (unpadded) row count
        mean = sum_ref[...] * inv_n
        # biased variance, clamped (guards f32 cancellation in E[y^2] - mean^2)
        var = jnp.maximum(sumsq_ref[...] * inv_n - mean * mean, 0.0)
        inv_std = jax.lax.rsqrt(var + EPS)
        scale = g_ref[...] * inv_std
        shift = b_ref[...] - mean * scale
        stats_ref[0:1, :] = scale
        stats_ref[1:2, :] = shift


def _bn_relu_kernel(y_ref, stats_ref, o_ref):
    """Pass 2: out = relu(y * scale + shift), in place over the y buffer."""
    scale = stats_ref[0:1, :]
    shift = stats_ref[1:2, :]
    o_ref[...] = jnp.maximum(y_ref[...] * scale + shift, 0.0).astype(o_ref.dtype)


@partial(jax.jit, static_argnames=("matmul_dtype", "tile_n"))
def nonlinear_forward(x, weight, bias, gamma, beta, *,
                      matmul_dtype=jnp.bfloat16, tile_n=None):
    """x: (..., in_dim) f32; weight: (out_dim, in_dim). Returns (..., out_dim) f32.

    `bias` is accepted for API parity with nn.Linear but is mathematically a no-op in
    front of training-mode BatchNorm, so the kernel does not use it.
    """
    del bias
    in_dim = x.shape[-1]
    out_dim = weight.shape[0]
    lead_shape = x.shape[:-1]

    x2d = x.reshape(-1, in_dim)                               # flatten(0, -2)
    n = x2d.shape[0]

    x_itemsize = jnp.dtype(matmul_dtype).itemsize
    if tile_n is None:
        tile_n = _pick_tile_n(n, in_dim, out_dim, x_itemsize)
    n_pad = _round_up(n, tile_n)
    if n_pad != n:
        # Zero rows contribute 0 to sum / sum-of-squares (no bias); divisor is the true n.
        x2d = jnp.pad(x2d, ((0, n_pad - n), (0, 0)))
    num_tiles = n_pad // tile_n

    x_mx = x2d.astype(matmul_dtype)
    w_mx = weight.T.astype(matmul_dtype)                      # (in_dim, out_dim), VMEM-resident
    g2d = gamma.reshape(1, out_dim).astype(jnp.float32)
    b2d = beta.reshape(1, out_dim).astype(jnp.float32)

    # ----- pass 1: matmul + BN statistics (sequential accumulation over row tiles) -----
    cost1 = pl.CostEstimate(
        flops=2 * n_pad * in_dim * out_dim + 4 * n_pad * out_dim,
        transcendentals=out_dim,
        bytes_accessed=(n_pad * in_dim * x_itemsize + in_dim * out_dim * x_itemsize
                        + n_pad * out_dim * 4 + 6 * out_dim * 4),
    )
    y, stats = pl.pallas_call(
        partial(_matmul_stats_kernel, n_rows=float(n)),
        out_shape=(jax.ShapeDtypeStruct((n_pad, out_dim), jnp.float32),
                   jax.ShapeDtypeStruct((2, out_dim), jnp.float32)),
        grid=(num_tiles,),
        in_specs=[
            pl.BlockSpec((tile_n, in_dim), lambda i: (i, 0)),      # streamed row tiles
            pl.BlockSpec((in_dim, out_dim), lambda i: (0, 0)),     # W resident across steps
            pl.BlockSpec((1, out_dim), lambda i: (0, 0)),          # gamma
            pl.BlockSpec((1, out_dim), lambda i: (0, 0)),          # beta
        ],
        out_specs=[
            pl.BlockSpec((tile_n, out_dim), lambda i: (i, 0)),     # y tiles
            pl.BlockSpec((2, out_dim), lambda i: (0, 0)),          # [scale; shift]
        ],
        scratch_shapes=[pltpu.VMEM((1, out_dim), jnp.float32),
                        pltpu.VMEM((1, out_dim), jnp.float32)],
        compiler_params=pltpu.CompilerParams(
            dimension_semantics=("arbitrary",),
            vmem_limit_bytes=VMEM_LIMIT_BYTES),
        cost_estimate=cost1,
    )(x_mx, w_mx, g2d, b2d)

    # ----- pass 2: normalize + ReLU (parallel over row tiles, in place over y) -----
    cost2 = pl.CostEstimate(
        flops=3 * n_pad * out_dim,
        transcendentals=0,
        bytes_accessed=2 * n_pad * out_dim * 4 + 2 * out_dim * 4,
    )
    out2d = pl.pallas_call(
        _bn_relu_kernel,
        out_shape=jax.ShapeDtypeStruct((n_pad, out_dim), jnp.float32),
        grid=(num_tiles,),
        in_specs=[
            pl.BlockSpec((tile_n, out_dim), lambda i: (i, 0)),
            pl.BlockSpec((2, out_dim), lambda i: (0, 0)),
        ],
        out_specs=pl.BlockSpec((tile_n, out_dim), lambda i: (i, 0)),
        input_output_aliases={0: 0},                               # reuse the y buffer
        compiler_params=pltpu.CompilerParams(
            dimension_semantics=("parallel",),
            vmem_limit_bytes=VMEM_LIMIT_BYTES),
        cost_estimate=cost2,
    )(y, stats)

    if n_pad != n:
        out2d = out2d[:n]
    return out2d.reshape(*lead_shape, out_dim)


def reference_forward(x, weight, bias, gamma, beta, matmul_dtype=jnp.float32):
    """Pure-JAX reference mirroring the PyTorch forward (training-mode BN, bias included)."""
    in_dim = x.shape[-1]
    out_dim = weight.shape[0]
    x2d = x.reshape(-1, in_dim)
    y = jnp.dot(x2d.astype(matmul_dtype), weight.T.astype(matmul_dtype),
                preferred_element_type=jnp.float32) + bias
    mean = jnp.mean(y, axis=0, keepdims=True)
    var = jnp.mean((y - mean) ** 2, axis=0, keepdims=True)
    y = (y - mean) * jax.lax.rsqrt(var + EPS) * gamma + beta
    y = jnp.maximum(y, 0.0)
    return y.reshape(*x.shape[:-1], out_dim)


if __name__ == "__main__":
    B, S = 2, 8            # flattened batch N = 16
    in_dim, out_dim = 32, 128

    key = jax.random.PRNGKey(0)
    kx, kw, kb = jax.random.split(key, 3)

    x = jax.random.normal(kx, (B, S, in_dim), dtype=jnp.float32)

    # PyTorch-Linear-style uniform init.
    bound = 1.0 / math.sqrt(in_dim)
    weight = jax.random.uniform(kw, (out_dim, in_dim), jnp.float32, -bound, bound)
    bias = jax.random.uniform(kb, (out_dim,), jnp.float32, -bound, bound)
    # BatchNorm1d affine params at init.
    gamma = jnp.ones((out_dim,), jnp.float32)
    beta = jnp.zeros((out_dim,), jnp.float32)

    out = nonlinear_forward(x, weight, bias, gamma, beta)
    out = jax.block_until_ready(out)
    assert out.shape == (B, S, out_dim)

    # Tight check vs a reference using the same bf16 matmul precision (kernel correctness).
    ref_match = reference_forward(x, weight, bias, gamma, beta, matmul_dtype=jnp.bfloat16)
    assert jnp.allclose(out, ref_match, atol=1e-4, rtol=1e-4), "mismatch vs bf16-matmul reference"

    # Loose sanity check vs the full-f32 reference (bf16 MXU inputs, f32 accumulation).
    ref_f32 = reference_forward(x, weight, bias, gamma, beta)
    assert jnp.allclose(out, ref_f32, atol=1e-1, rtol=5e-2), "mismatch vs f32 reference"

    print("KERNEL_OK")
</pallas_src>

<mosaic_0001>
module attributes {stable_mosaic.version = 11 : i64} {
  func.func @_bn_relu_kernel(%arg0: i32, %arg1: memref<16x128xf32, #tpu.memory_space<vmem>>, %arg2: memref<2x128xf32, #tpu.memory_space<vmem>>, %arg3: memref<16x128xf32, #tpu.memory_space<vmem>>) attributes {dimension_semantics = [#tpu.dimension_semantics<parallel>], iteration_bounds = array<i64: 1>, scalar_prefetch = 0 : i64, scratch_operands = 0 : i64, tpu.core_type = #tpu.core_type<tc>, window_params = [{transform_indices = @transform_0, window_bounds = array<i64: 16, 128>}, {pipeline_mode = #tpu.pipeline_mode<synchronous>, transform_indices = @transform_1, window_bounds = array<i64: 2, 128>}, {transform_indices = @transform_2, window_bounds = array<i64: 16, 128>}]} {
    %c0 = arith.constant 0 : index
    %c0_0 = arith.constant 0 : index
    %0 = vector.load %arg2[%c0, %c0_0] : memref<2x128xf32, #tpu.memory_space<vmem>>, vector<1x128xf32>
    %c1 = arith.constant 1 : index
    %c0_1 = arith.constant 0 : index
    %1 = vector.load %arg2[%c1, %c0_1] : memref<2x128xf32, #tpu.memory_space<vmem>>, vector<1x128xf32>
    %c0_2 = arith.constant 0 : index
    %c0_3 = arith.constant 0 : index
    %2 = vector.load %arg1[%c0_2, %c0_3] : memref<16x128xf32, #tpu.memory_space<vmem>>, vector<16x128xf32>
    %3 = vector.broadcast %0 : vector<1x128xf32> to vector<16x128xf32>
    %4 = arith.mulf %2, %3 : vector<16x128xf32>
    %5 = vector.broadcast %1 : vector<1x128xf32> to vector<16x128xf32>
    %6 = arith.addf %4, %5 : vector<16x128xf32>
    %cst = arith.constant 0.000000e+00 : f32
    %7 = vector.broadcast %cst : f32 to vector<16x128xf32>
    %8 = arith.maximumf %6, %7 : vector<16x128xf32>
    %c0_4 = arith.constant 0 : index
    %c0_5 = arith.constant 0 : index
    %9 = vector.load %arg3[%c0_4, %c0_5] : memref<16x128xf32, #tpu.memory_space<vmem>>, vector<16x128xf32>
    tpu.vector_store %arg3[%c0_4, %c0_5], %8 {strides = array<i32>} : memref<16x128xf32, #tpu.memory_space<vmem>>, vector<16x128xf32>,
    return
  }
  func.func @transform_0(%arg0: i32) -> (i32, i32) {
    %c0_i32 = arith.constant 0 : i32
    %c0_i32_0 = arith.constant 0 : i32
    return %arg0, %c0_i32 : i32, i32
  }
  func.func @transform_1(%arg0: i32) -> (i32, i32) {
    %c0_i32 = arith.constant 0 : i32
    %c0_i32_0 = arith.constant 0 : i32
    %c0_i32_1 = arith.constant 0 : i32
    return %c0_i32, %c0_i32_0 : i32, i32
  }
  func.func @transform_2(%arg0: i32) -> (i32, i32) {
    %c0_i32 = arith.constant 0 : i32
    %c0_i32_0 = arith.constant 0 : i32
    return %arg0, %c0_i32 : i32, i32
  }
}

module attributes {stable_mosaic.version = 11 : i64} {
  func.func @_matmul_stats_kernel(%arg0: i32, %arg1: memref<16x32xbf16, #tpu.memory_space<vmem>>, %arg2: memref<32x128xbf16, #tpu.memory_space<vmem>>, %arg3: memref<1x128xf32, #tpu.memory_space<vmem>>, %arg4: memref<1x128xf32, #tpu.memory_space<vmem>>, %arg5: memref<16x128xf32, #tpu.memory_space<vmem>>, %arg6: memref<2x128xf32, #tpu.memory_space<vmem>>, %arg7: memref<1x128xf32, #tpu.memory_space<vmem>>, %arg8: memref<1x128xf32, #tpu.memory_space<vmem>>) attributes {dimension_semantics = [#tpu.dimension_semantics<arbitrary>], iteration_bounds = array<i64: 1>, scalar_prefetch = 0 : i64, scratch_operands = 2 : i64, tpu.core_type = #tpu.core_type<tc>, window_params = [{transform_indices = @transform_0, window_bounds = array<i64: 16, 32>}, {pipeline_mode = #tpu.pipeline_mode<synchronous>, transform_indices = @transform_1, window_bounds = array<i64: 32, 128>}, {pipeline_mode = #tpu.pipeline_mode<synchronous>, transform_indices = @transform_2, window_bounds = array<i64: 1, 128>}, {pipeline_mode = #tpu.pipeline_mode<synchronous>, transform_indices = @transform_3, window_bounds = array<i64: 1, 128>}, {transform_indices = @transform_4, window_bounds = array<i64: 16, 128>}, {pipeline_mode = #tpu.pipeline_mode<synchronous>, transform_indices = @transform_5, window_bounds = array<i64: 2, 128>}]} {
    %c0_i32 = arith.constant 0 : i32
    %0 = arith.cmpi eq, %arg0, %c0_i32 : i32
    %1 = arith.extui %0 : i1 to i32
    %c0_i32_0 = arith.constant 0 : i32
    %2 = arith.cmpi ne, %1, %c0_i32_0 : i32
    scf.if %2 {
      %cst_18 = arith.constant 0.000000e+00 : f32
      %21 = vector.broadcast %cst_18 : f32 to vector<1x128xf32>
      %c0_19 = arith.constant 0 : index
      %c0_20 = arith.constant 0 : index
      %22 = vector.load %arg7[%c0_19, %c0_20] : memref<1x128xf32, #tpu.memory_space<vmem>>, vector<1x128xf32>
      tpu.vector_store %arg7[%c0_19, %c0_20], %21 {strides = array<i32>} : memref<1x128xf32, #tpu.memory_space<vmem>>, vector<1x128xf32>,
      %cst_21 = arith.constant 0.000000e+00 : f32
      %23 = vector.broadcast %cst_21 : f32 to vector<1x128xf32>
      %c0_22 = arith.constant 0 : index
      %c0_23 = arith.constant 0 : index
      %24 = vector.load %arg8[%c0_22, %c0_23] : memref<1x128xf32, #tpu.memory_space<vmem>>, vector<1x128xf32>
      tpu.vector_store %arg8[%c0_22, %c0_23], %23 {strides = array<i32>} : memref<1x128xf32, #tpu.memory_space<vmem>>, vector<1x128xf32>,
    } else {
    }
    %c0 = arith.constant 0 : index
    %c0_1 = arith.constant 0 : index
    %3 = vector.load %arg1[%c0, %c0_1] : memref<16x32xbf16, #tpu.memory_space<vmem>>, vector<16x32xbf16>
    %c0_2 = arith.constant 0 : index
    %c0_3 = arith.constant 0 : index
    %4 = vector.load %arg2[%c0_2, %c0_3] : memref<32x128xbf16, #tpu.memory_space<vmem>>, vector<32x128xbf16>
    %cst = arith.constant dense<0.000000e+00> : vector<16x128xf32>
    %5 = tpu.matmul %3, %4, %cst {dimension_numbers = #tpu.dot_dimension_numbers<[1], [0], [0], [1], [0, 0, 1, 1], [], []>} : vector<16x32xbf16>, vector<32x128xbf16>, vector<16x128xf32> -> vector<16x128xf32>
    %c0_4 = arith.constant 0 : index
    %c0_5 = arith.constant 0 : index
    %6 = vector.load %arg5[%c0_4, %c0_5] : memref<16x128xf32, #tpu.memory_space<vmem>>, vector<16x128xf32>
    tpu.vector_store %arg5[%c0_4, %c0_5], %5 {strides = array<i32>} : memref<16x128xf32, #tpu.memory_space<vmem>>, vector<16x128xf32>,
    %c0_6 = arith.constant 0 : index
    %c0_7 = arith.constant 0 : index
    %7 = vector.load %arg7[%c0_6, %c0_7] : memref<1x128xf32, #tpu.memory_space<vmem>>, vector<1x128xf32>
    %cst_8 = arith.constant dense<0.000000e+00> : vector<128xf32>
    %8 = vector.multi_reduction <add>, %5, %cst_8 [0] : vector<16x128xf32> to vector<128xf32>
    %9 = vector.shape_cast %8 : vector<128xf32> to vector<1x128xf32>
    %10 = arith.addf %7, %9 : vector<1x128xf32>
    %c0_9 = arith.constant 0 : index
    %c0_10 = arith.constant 0 : index
    %11 = vector.load %arg7[%c0_9, %c0_10] : memref<1x128xf32, #tpu.memory_space<vmem>>, vector<1x128xf32>
    tpu.vector_store %arg7[%c0_9, %c0_10], %10 {strides = array<i32>} : memref<1x128xf32, #tpu.memory_space<vmem>>, vector<1x128xf32>,
    %c0_11 = arith.constant 0 : index
    %c0_12 = arith.constant 0 : index
    %12 = vector.load %arg8[%c0_11, %c0_12] : memref<1x128xf32, #tpu.memory_space<vmem>>, vector<1x128xf32>
    %13 = arith.mulf %5, %5 : vector<16x128xf32>
    %cst_13 = arith.constant dense<0.000000e+00> : vector<128xf32>
    %14 = vector.multi_reduction <add>, %13, %cst_13 [0] : vector<16x128xf32> to vector<128xf32>
    %15 = vector.shape_cast %14 : vector<128xf32> to vector<1x128xf32>
    %16 = arith.addf %12, %15 : vector<1x128xf32>
    %c0_14 = arith.constant 0 : index
    %c0_15 = arith.constant 0 : index
    %17 = vector.load %arg8[%c0_14, %c0_15] : memref<1x128xf32, #tpu.memory_space<vmem>>, vector<1x128xf32>
    tpu.vector_store %arg8[%c0_14, %c0_15], %16 {strides = array<i32>} : memref<1x128xf32, #tpu.memory_space<vmem>>, vector<1x128xf32>,
    %c0_i32_16 = arith.constant 0 : i32
    %18 = arith.cmpi eq, %arg0, %c0_i32_16 : i32
    %19 = arith.extui %18 : i1 to i32
    %c0_i32_17 = arith.constant 0 : i32
    %20 = arith.cmpi ne, %19, %c0_i32_17 : i32
    scf.if %20 {
      %c0_18 = arith.constant 0 : index
      %c0_19 = arith.constant 0 : index
      %21 = vector.load %arg7[%c0_18, %c0_19] : memref<1x128xf32, #tpu.memory_space<vmem>>, vector<1x128xf32>
      %cst_20 = arith.constant 6.250000e-02 : f32
      %22 = vector.broadcast %cst_20 : f32 to vector<1x128xf32>
      %23 = arith.mulf %21, %22 : vector<1x128xf32>
      %c0_21 = arith.constant 0 : index
      %c0_22 = arith.constant 0 : index
      %24 = vector.load %arg8[%c0_21, %c0_22] : memref<1x128xf32, #tpu.memory_space<vmem>>, vector<1x128xf32>
      %cst_23 = arith.constant 6.250000e-02 : f32
      %25 = vector.broadcast %cst_23 : f32 to vector<1x128xf32>
      %26 = arith.mulf %24, %25 : vector<1x128xf32>
      %27 = arith.mulf %23, %23 : vector<1x128xf32>
      %28 = arith.subf %26, %27 : vector<1x128xf32>
      %cst_24 = arith.constant 0.000000e+00 : f32
      %29 = vector.broadcast %cst_24 : f32 to vector<1x128xf32>
      %30 = arith.maximumf %28, %29 : vector<1x128xf32>
      %cst_25 = arith.constant 9.99999974E-6 : f32
      %31 = vector.broadcast %cst_25 : f32 to vector<1x128xf32>
      %32 = arith.addf %30, %31 : vector<1x128xf32>
      %33 = math.rsqrt %32 : vector<1x128xf32>
      %c0_26 = arith.constant 0 : index
      %c0_27 = arith.constant 0 : index
      %34 = vector.load %arg3[%c0_26, %c0_27] : memref<1x128xf32, #tpu.memory_space<vmem>>, vector<1x128xf32>
      %35 = arith.mulf %34, %33 : vector<1x128xf32>
      %c0_28 = arith.constant 0 : index
      %c0_29 = arith.constant 0 : index
      %36 = vector.load %arg4[%c0_28, %c0_29] : memref<1x128xf32, #tpu.memory_space<vmem>>, vector<1x128xf32>
      %37 = arith.mulf %23, %35 : vector<1x128xf32>
      %38 = arith.subf %36, %37 : vector<1x128xf32>
      %c0_30 = arith.constant 0 : index
      %c0_31 = arith.constant 0 : index
      %39 = vector.load %arg6[%c0_30, %c0_31] : memref<2x128xf32, #tpu.memory_space<vmem>>, vector<1x128xf32>
      tpu.vector_store %arg6[%c0_30, %c0_31], %35 {strides = array<i32>} : memref<2x128xf32, #tpu.memory_space<vmem>>, vector<1x128xf32>,
      %c1 = arith.constant 1 : index
      %c0_32 = arith.constant 0 : index
      %40 = vector.load %arg6[%c1, %c0_32] : memref<2x128xf32, #tpu.memory_space<vmem>>, vector<1x128xf32>
      tpu.vector_store %arg6[%c1, %c0_32], %38 {strides = array<i32>} : memref<2x128xf32, #tpu.memory_space<vmem>>, vector<1x128xf32>,
    } else {
    }
    return
  }
  func.func @transform_0(%arg0: i32) -> (i32, i32) {
    %c0_i32 = arith.constant 0 : i32
    %c0_i32_0 = arith.constant 0 : i32
    return %arg0, %c0_i32 : i32, i32
  }
  func.func @transform_1(%arg0: i32) -> (i32, i32) {
    %c0_i32 = arith.constant 0 : i32
    %c0_i32_0 = arith.constant 0 : i32
    %c0_i32_1 = arith.constant 0 : i32
    return %c0_i32, %c0_i32_0 : i32, i32
  }
  func.func @transform_2(%arg0: i32) -> (i32, i32) {
    %c0_i32 = arith.constant 0 : i32
    %c0_i32_0 = arith.constant 0 : i32
    %c0_i32_1 = arith.constant 0 : i32
    return %c0_i32, %c0_i32_0 : i32, i32
  }
  func.func @transform_3(%arg0: i32) -> (i32, i32) {
    %c0_i32 = arith.constant 0 : i32
    %c0_i32_0 = arith.constant 0 : i32
    %c0_i32_1 = arith.constant 0 : i32
    return %c0_i32, %c0_i32_0 : i32, i32
  }
  func.func @transform_4(%arg0: i32) -> (i32, i32) {
    %c0_i32 = arith.constant 0 : i32
    %c0_i32_0 = arith.constant 0 : i32
    return %arg0, %c0_i32 : i32, i32
  }
  func.func @transform_5(%arg0: i32) -> (i32, i32) {
    %c0_i32 = arith.constant 0 : i32
    %c0_i32_0 = arith.constant 0 : i32
    %c0_i32_1 = arith.constant 0 : i32
    return %c0_i32, %c0_i32_0 : i32, i32
  }
}

</mosaic_0001>

<llo_original>
// kernel: nonlinear_forward.3
$region0: #{nonlinear_forward.3}
  #allocation0 [shape = 'u32[]', space=smem, size = 0x4, offset = 0x4, fixed_abs, tag = 'smem constant byte address 0x4 - core index']
  #allocation1 [shape = 'u32[144,128]{1,0:T(1,128)}', space=vmem, size = 0x12000, scoped, tag = 'internal scratch']
  %s0 = inlined_call_operand.vmem [shape: f32[16,128], index: 0, kind: input, shape index: {}, may-alias: {0,2}]
  %s1 = inlined_call_operand.vmem [shape: f32[2,128], index: 1, kind: input, shape index: {}]
  %s2 = inlined_call_operand.vmem [shape: f32[16,128], index: 2, kind: output, shape index: {}, may-alias: {0,2}]
  %s3 = sld [smem:[#allocation0]]
  $region18: #{nonlinear_forward.3} parent=0
    _
  %s5 = ssub.s32 1, %s3
  %s6 = scalar_select 0, %s5, %s3
  // Predicated region
  $region2: #{nonlinear_forward.3} parent=0 // pred_check
    _
  $region3: #{nonlinear_forward.3} parent=0 // pred_check_branch
    %8 = sbr.rel (0) target = $region5
  $region4: #{nonlinear_forward.3} parent=0 // pred_region
    _
  $region5: #{nonlinear_forward.3} parent=0 // pred_fallthru
    _
  // Predicated region
  $region6: #{nonlinear_forward.3} parent=0 // pred_check
    _
  $region7: #{nonlinear_forward.3} parent=0 // pred_check_branch
    %10 = sbr.rel (0) target = $region9
  $region8: #{nonlinear_forward.3} parent=0 // pred_region
    _
  $region9: #{nonlinear_forward.3} parent=0 // pred_fallthru
    _
  %v11 = vld [vmem:[%s1] sm:$0x1]
  %v12 = vld [vmem:[%s1 + $0x1] sm:$0x1]
  %v13 = vld [vmem:[%s0] sm:$0xff]
  %v14 = vld [vmem:[%s0 + $0x8] sm:$0xff]
  %v15 = vlaneseq
  %v16 = vshrl.u32 %v15, 7
  %v17 = vsub.s32 0, %v16
  %v18 = vrot.slane %v11, %v17
  %v19 = vmul.f32 %v13, %v18
  %v20 = vmul.f32 %v14, %v18
  %v21 = vlaneseq
  %v22 = vshrl.u32 %v21, 7
  %v23 = vsub.s32 0, %v22
  %v24 = vrot.slane %v12, %v23
  %v25 = vadd.f32 %v19, %v24
  %v26 = vadd.f32 %v20, %v24
  %v27 = vmax.f32 %v25, 0.0
  %v28 = vmax.f32 %v26, 0.0
  %29 = vst [vmem:[%s2] sm:$0xff] %v27
  %30 = vst [vmem:[%s2 + $0x8] sm:$0xff] %v28
  // Predicated region
  $region10: #{nonlinear_forward.3} parent=0 // pred_check
    _
  $region11: #{nonlinear_forward.3} parent=0 // pred_check_branch
    %32 = sbr.rel (0) target = $region13
  $region12: #{nonlinear_forward.3} parent=0 // pred_region
    _
  $region13: #{nonlinear_forward.3} parent=0 // pred_fallthru
    _
  // Predicated region
  $region14: #{nonlinear_forward.3} parent=0 // pred_check
    _
  $region15: #{nonlinear_forward.3} parent=0 // pred_check_branch
    %34 = sbr.rel (0) target = $region17
  $region16: #{nonlinear_forward.3} parent=0 // pred_region
    _
  $region17: #{nonlinear_forward.3} parent=0 // pred_fallthru
    _

// kernel: nonlinear_forward.2
$region0: #{nonlinear_forward.2}
  #allocation0 [shape = 'u32[]', space=smem, size = 0x4, offset = 0x4, fixed_abs, tag = 'smem constant byte address 0x4 - core index']
  #allocation1 [shape = 'u32[144,128]{1,0:T(1,128)}', space=vmem, size = 0x12000, scoped, tag = 'internal scratch']
  #allocation2 [shape = 'f32[1,128]{1,0:T(1,128)}', space=vmem, size = 0x200, scoped, tag = 'scratch operand']
  #allocation3 [shape = 'f32[1,128]{1,0:T(1,128)}', space=vmem, size = 0x200, scoped, tag = 'scratch operand']
  %s0 = inlined_call_operand.vmem [shape: bf16[16,32], index: 0, kind: input, shape index: {}]
  %s1 = inlined_call_operand.vmem [shape: bf16[32,128], index: 1, kind: input, shape index: {}]
  %s2 = inlined_call_operand.vmem [shape: f32[1,128], index: 2, kind: input, shape index: {}]
  %s3 = inlined_call_operand.vmem [shape: f32[1,128], index: 3, kind: input, shape index: {}]
  %s4 = inlined_call_operand.vmem [shape: f32[16,128], index: 4, kind: output, shape index: {0}]
  %s5 = inlined_call_operand.vmem [shape: f32[2,128], index: 5, kind: output, shape index: {1}]
  %6 = xla_tuple %s4, %s5
  %s7 = sld [smem:[#allocation0]]
  $region42: #{nonlinear_forward.2} parent=0
    _
  %s9 = ssub.s32 1, %s7
  %s10 = scalar_select 0, %s9, %s7
  // Predicated region
  $region2: #{nonlinear_forward.2} parent=0 // pred_check
    _
  $region3: #{nonlinear_forward.2} parent=0 // pred_check_branch
    %12 = sbr.rel (0) target = $region5
  $region4: #{nonlinear_forward.2} parent=0 // pred_region
    _
  $region5: #{nonlinear_forward.2} parent=0 // pred_fallthru
    _
  // Predicated region
  $region6: #{nonlinear_forward.2} parent=0 // pred_check
    _
  $region7: #{nonlinear_forward.2} parent=0 // pred_check_branch
    %14 = sbr.rel (0) target = $region9
  $region8: #{nonlinear_forward.2} parent=0 // pred_region
    _
  $region9: #{nonlinear_forward.2} parent=0 // pred_fallthru
    _
  // Predicated region
  $region10: #{nonlinear_forward.2} parent=0 // pred_check
    _
  $region11: #{nonlinear_forward.2} parent=0 // pred_check_branch
    %16 = sbr.rel (0) target = $region13
  $region12: #{nonlinear_forward.2} parent=0 // pred_region
    _
  $region13: #{nonlinear_forward.2} parent=0 // pred_fallthru
    _
  // Predicated region
  $region14: #{nonlinear_forward.2} parent=0 // pred_check
    _
  $region15: #{nonlinear_forward.2} parent=0 // pred_check_branch
    %18 = sbr.rel (0) target = $region17
  $region16: #{nonlinear_forward.2} parent=0 // pred_region
    _
  $region17: #{nonlinear_forward.2} parent=0 // pred_fallthru
    _
  %p20 = scmp.eq.s32.totalorder 0, 0
  // Predicated region
  $region18: #{nonlinear_forward.2} parent=0 // pred_check
    %p21 = pneg %p20
  $region19: #{nonlinear_forward.2} parent=0 // pred_check_branch
    %23 = sbr.rel (%p21) target = $region21
  $region20: #{nonlinear_forward.2} parent=0 // pred_region
    %24 = vst [vmem:[#allocation2] sm:$0x1] 0.0
    %25 = vst [vmem:[#allocation3] sm:$0x1] 0.0
  $region21: #{nonlinear_forward.2} parent=0 // pred_fallthru
    _
  %v26 = vld [vmem:[%s0] sm:$0xf]
  %v27 = vld [vmem:[%s0 + $0x4] sm:$0xf]
  %v28 = vld [vmem:[%s1] sm:$0xf]
  %v29 = vld [vmem:[%s1 + $0x4] sm:$0xf]
  %v30 = vld [vmem:[%s1 + $0x8] sm:$0xf]
  %v31 = vld [vmem:[%s1 + $0xc] sm:$0xf]
  %v34 = vunpack.c.l.b16 %v26
  %v35 = vunpack.c.l.b16 %v27
  %v36 = vpack.c.b16 %v35, %v34
  %v41 = vunpack.c.l.b16 %v28
  %v42 = vunpack.c.l.b16 %v29
  %v43 = vunpack.c.l.b16 %v30
  %v44 = vunpack.c.l.b16 %v31
  %v45 = vpack.c.b16 %v42, %v41
  %v46 = vpack.c.b16 %v44, %v43
  %vm49 = vcmask 261120
  %v51 = vsel %vm49, %v36, 0
  %53 = vmatprep.subr.bf16.mxu0 0
  %54 = vmatpush1.bf16.msra.mxu0 %v45
  %55 = vmatprep.subr.bf16.mxu0 0
  %56 = vmatpush1.bf16.msra.mxu0 %v46
  %57 = vmatprep.subr.bf16.mxu0 0
  %58 = vmatpush1.bf16.msra.mxu0 0
  %59 = vmatprep.subr.bf16.mxu0 0
  %60 = vmatpush1.bf16.msra.mxu0 0
  %61 = vmatprep.subr.bf16.mxu0 0
  %62 = vmatpush1.bf16.msra.mxu0 0
  %63 = vmatprep.subr.bf16.mxu0 0
  %64 = vmatpush1.bf16.msra.mxu0 0
  %65 = vmatprep.subr.bf16.mxu0 0
  %66 = vmatpush1.bf16.msra.mxu0 0
  %67 = vmatprep.subr.bf16.mxu0 0
  %68 = vmatpush1.bf16.msra.mxu0 0
  %69 = vmatprep.subr.bf16.mxu0 0
  %70 = vmatpush1.bf16.msra.mxu0 0
  %71 = vmatprep.subr.bf16.mxu0 0
  %72 = vmatpush1.bf16.msra.mxu0 0
  %73 = vmatprep.subr.bf16.mxu0 0
  %74 = vmatpush1.bf16.msra.mxu0 0
  %75 = vmatprep.subr.bf16.mxu0 0
  %76 = vmatpush1.bf16.msra.mxu0 0
  %77 = vmatprep.subr.bf16.mxu0 0
  %78 = vmatpush1.bf16.msra.mxu0 0
  %79 = vmatprep.subr.bf16.mxu0 0
  %80 = vmatpush1.bf16.msra.mxu0 0
  %81 = vmatprep.subr.bf16.mxu0 0
  %82 = vmatpush1.bf16.msra.mxu0 0
  %83 = vmatprep.subr.bf16.mxu0 0
  %84 = vmatpush1.bf16.msra.mxu0 0
  %85 = vmatprep.mubr.bf16.mxu0 0
  %86 = vmatmul.mubr.bf16.gmra.mrb[0].mxu0 %v51
  %v87 = vpop.f32.mrb[0].mxu0
  %v88 = vadd.f32 0.0, %v87
  %v89 = vpop.f32.mrb[0].mxu0
  %v90 = vpop.f32.mrb[0].mxu0
  %v91 = vadd.f32 0.0, %v90
  %v92 = vpop.f32.mrb[0].mxu0
  %93 = vdwg.mxu0
  %94 = vst [vmem:[%s4] sm:$0xff] %v88
  %95 = vst [vmem:[%s4 + $0x8] sm:$0xff] %v91
  %v96 = vld [vmem:[#allocation2] sm:$0x1]
  %v97 = vadd.f32 %v88, %v91
  %v98 = vrot.slane %v97, 4
  %v99 = vadd.f32 %v97, %v98
  %v100 = vrot.slane %v99, 2
  %v101 = vadd.f32 %v99, %v100
  %v102 = vrot.slane %v101, 1
  %v103 = vadd.f32 %v101, %v102
  %v104 = vadd.f32 %v96, %v103
  %105 = vst [vmem:[#allocation2] sm:$0x1] %v104
  %v106 = vld [vmem:[#allocation3] sm:$0x1]
  %v107 = vmul.f32 %v88, %v88
  %v108 = vmul.f32 %v91, %v91
  %v109 = vadd.f32 %v107, %v108
  %v110 = vrot.slane %v109, 4
  %v111 = vadd.f32 %v109, %v110
  %v112 = vrot.slane %v111, 2
  %v113 = vadd.f32 %v111, %v112
  %v114 = vrot.slane %v113, 1
  %v115 = vadd.f32 %v113, %v114
  %v116 = vadd.f32 %v106, %v115
  %117 = vst [vmem:[#allocation3] sm:$0x1] %v116
  // Predicated region
  $region22: #{nonlinear_forward.2} parent=0 // pred_check
    %p118 = pneg %p20
  $region23: #{nonlinear_forward.2} parent=0 // pred_check_branch
    %120 = sbr.rel (%p118) target = $region25
  $region24: #{nonlinear_forward.2} parent=0 // pred_region
    %v121 = vld [vmem:[#allocation2] sm:$0x1]
    %v122 = vmul.f32 %v121, 0.0625
    %v123 = vld [vmem:[#allocation3] sm:$0x1]
    %v124 = vmul.f32 %v123, 0.0625
    %v125 = vmul.f32 %v122, %v122
    %v126 = vsub.f32 %v124, %v125
    %v127 = vmax.f32 %v126, 0.0
    %v128 = vadd.f32 %v127, 1e-05
    %v129 = vrsqrt.pop %v128
    %v130 = vld [vmem:[%s2] sm:$0x1]
    %v131 = vmul.f32 %v130, %v129
    %v132 = vld [vmem:[%s3] sm:$0x1]
    %v133 = vmul.f32 %v122, %v131
    %v134 = vsub.f32 %v132, %v133
    %135 = vst [vmem:[%s5] sm:$0x1] %v131
    %136 = vst [vmem:[%s5 + $0x1] sm:$0x1] %v134
  $region25: #{nonlinear_forward.2} parent=0 // pred_fallthru
    _
  // Predicated region
  $region26: #{nonlinear_forward.2} parent=0 // pred_check
    _
  $region27: #{nonlinear_forward.2} parent=0 // pred_check_branch
    %138 = sbr.rel (0) target = $region29
  $region28: #{nonlinear_forward.2} parent=0 // pred_region
    _
  $region29: #{nonlinear_forward.2} parent=0 // pred_fallthru
    _
  // Predicated region
  $region30: #{nonlinear_forward.2} parent=0 // pred_check
    _
  $region31: #{nonlinear_forward.2} parent=0 // pred_check_branch
    %140 = sbr.rel (0) target = $region33
  $region32: #{nonlinear_forward.2} parent=0 // pred_region
    _
  $region33: #{nonlinear_forward.2} parent=0 // pred_fallthru
    _
  // Predicated region
  $region34: #{nonlinear_forward.2} parent=0 // pred_check
    _
  $region35: #{nonlinear_forward.2} parent=0 // pred_check_branch
    %142 = sbr.rel (0) target = $region37
  $region36: #{nonlinear_forward.2} parent=0 // pred_region
    _
  $region37: #{nonlinear_forward.2} parent=0 // pred_fallthru
    _
  // Predicated region
  $region38: #{nonlinear_forward.2} parent=0 // pred_check
    _
  $region39: #{nonlinear_forward.2} parent=0 // pred_check_branch
    %144 = sbr.rel (0) target = $region41
  $region40: #{nonlinear_forward.2} parent=0 // pred_region
    _
  $region41: #{nonlinear_forward.2} parent=0 // pred_fallthru
    _

</llo_original>
